<compile_context>
chip_gen: v7x
topology: tpu7x:2x2x1
jax: 0.10.0
libtpu: 0.0.40
codegen_flags: <defaults>
</compile_context>

<pallas_src>
import math
import functools

import jax
import jax.numpy as jnp
from jax import lax
from jax.experimental import pallas as pl
from jax.experimental.pallas import tpu as pltpu


def _round_up(x, m):
    return ((x + m - 1) // m) * m


def _cluster_loss_kernel(emb_ref, w_ref, tgt_ref, out_ref, *,
                         num_classes, num_centers, temperature,
                         temperature_centers, true_batch, block_rows):
    # emb_ref: (tb, E)      compute dtype (f32 or bf16)   VMEM
    # w_ref:   (E, K*C)     compute dtype, center-major columns (j = k*C + c)
    # tgt_ref: (tb, 1)      int32 class targets
    # out_ref: (tb, 1)      f32 per-row loss (0 for padded rows)
    i = pl.program_id(0)
    emb = emb_ref[...]
    w = w_ref[...]

    # Single fused MXU matmul over all centers/classes, f32 accumulation.
    raw = jnp.dot(emb, w, preferred_element_type=jnp.float32)      # (tb, N)

    # Fold F.normalize(weight, dim=1) into a per-column logit scale.
    wf = w.astype(jnp.float32)
    colsq = jnp.sum(wf * wf, axis=0, keepdims=True)                # (1, N)
    inv_norm = 1.0 / jnp.maximum(jnp.sqrt(colsq), 1e-12)           # F.normalize eps
    logits = raw * inv_norm                                        # (tb, N)

    C = num_classes
    if num_centers > 1:
        # Soft assignment over centers: softmax(logits / T_c) along centers,
        # then weighted sum.  Columns are center-major, so each center's
        # class block is a contiguous lane slice.
        per_center = [logits[:, k * C:(k + 1) * C] for k in range(num_centers)]
        scaled = [l * (1.0 / temperature_centers) for l in per_center]
        m = scaled[0]
        for s in scaled[1:]:
            m = jnp.maximum(m, s)
        exps = [jnp.exp(s - m) for s in scaled]
        esum = exps[0]
        for e in exps[1:]:
            esum = esum + e
        inv = 1.0 / esum
        final = per_center[0] * (exps[0] * inv)
        for l, e in zip(per_center[1:], exps[1:]):
            final = final + l * (e * inv)
    else:
        final = logits                                             # (tb, C)

    # Cross-entropy with temperature scaling (per-row; mean happens outside).
    z = final * (1.0 / temperature)                                # (tb, C)
    zmax = jnp.max(z, axis=1, keepdims=True)
    lse = jnp.log(jnp.sum(jnp.exp(z - zmax), axis=1, keepdims=True)) + zmax
    tgt = tgt_ref[...]                                             # (tb, 1)
    col = lax.broadcasted_iota(jnp.int32, z.shape, 1)
    picked = jnp.sum(jnp.where(col == tgt, z, 0.0), axis=1, keepdims=True)
    per_row = lse - picked                                         # (tb, 1)

    # Mask padded batch rows so the wrapper's sum / true_B is exact.
    row = i * block_rows + lax.broadcasted_iota(jnp.int32, per_row.shape, 0)
    out_ref[...] = jnp.where(row < true_batch, per_row, 0.0)


def cluster_loss(embeddings, weight, targets, *, num_classes, num_centers,
                 temperature=0.05, temperature_centers=0.1,
                 hierarchy_level=None, block_rows=128,
                 compute_dtype=jnp.bfloat16):
    """Pallas implementation of ClusterLoss.forward.

    embeddings: (B, E) float
    weight:     (num_classes * num_centers, E) float (raw parameter,
                rows ordered class-major: row = c * num_centers + k)
    targets:    (B,) int class ids, or (B, L) with hierarchy_level set
    returns scalar f32 loss
    """
    if hierarchy_level is not None and targets.ndim == 2:
        targets = targets[:, hierarchy_level]

    B, E = embeddings.shape
    C, K = num_classes, num_centers
    N = K * C
    assert weight.shape == (C * K, E)

    # Glue (layout only): center-major columns, pre-transposed so the kernel
    # does a plain (tb, E) @ (E, N) matmul.  Column j = k*C + c.
    w_t = (weight.astype(jnp.float32)
           .reshape(C, K, E).transpose(1, 0, 2)
           .reshape(N, E).T).astype(compute_dtype)                 # (E, N)

    # Batch tiling: multiple of 8 sublanes, bounded VMEM footprint.
    tb = min(block_rows, _round_up(B, 8))
    tb = _round_up(tb, 8)
    B_pad = _round_up(B, tb)
    num_tiles = B_pad // tb

    emb = embeddings.astype(compute_dtype)
    tgt = targets.astype(jnp.int32).reshape(B, 1)
    if B_pad != B:
        emb = jnp.pad(emb, ((0, B_pad - B), (0, 0)))
        tgt = jnp.pad(tgt, ((0, B_pad - B), (0, 0)))

    kernel = functools.partial(
        _cluster_loss_kernel,
        num_classes=C, num_centers=K,
        temperature=temperature, temperature_centers=temperature_centers,
        true_batch=B, block_rows=tb)

    itemsize = jnp.dtype(compute_dtype).itemsize
    vmem_need = (2 * E * N * itemsize          # resident weight (+slack)
                 + 4 * tb * E * itemsize       # double-buffered embedding tile
                 + 4 * tb * 4                  # targets + per-row output tiles
                 + 8 * tb * N * 4              # f32 logit intermediates
                 + (2 << 20))
    vmem_limit = int(min(max(vmem_need, 32 * 1024 * 1024), 64 * 1024 * 1024))

    per_row = pl.pallas_call(
        kernel,
        out_shape=jax.ShapeDtypeStruct((B_pad, 1), jnp.float32),
        grid_spec=pltpu.PrefetchScalarGridSpec(
            num_scalar_prefetch=0,
            grid=(num_tiles,),
            in_specs=[
                pl.BlockSpec((tb, E), lambda i: (i, 0)),   # embedding tile
                pl.BlockSpec((E, N), lambda i: (0, 0)),    # resident weight
                pl.BlockSpec((tb, 1), lambda i: (i, 0)),   # targets tile
            ],
            out_specs=pl.BlockSpec((tb, 1), lambda i: (i, 0)),
        ),
        compiler_params=pltpu.CompilerParams(
            dimension_semantics=("parallel",),
            vmem_limit_bytes=vmem_limit),
    )(emb, w_t, tgt)

    # Tiny reduction of per-row losses outside the kernel (true-B divisor).
    return jnp.sum(per_row) / B


def cluster_loss_ref(embeddings, weight, targets, *, num_classes, num_centers,
                     temperature=0.05, temperature_centers=0.1):
    """Pure-JAX reference mirroring the PyTorch forward."""
    nw = weight / jnp.maximum(
        jnp.linalg.norm(weight, axis=1, keepdims=True), 1e-12)
    logits = embeddings @ nw.T                              # (B, C*K)
    if num_centers > 1:
        logits = logits.reshape(embeddings.shape[0], num_classes, num_centers)
        prob = jax.nn.softmax(logits / temperature_centers, axis=2)
        logits = (logits * prob).sum(axis=2)
    z = logits / temperature
    logp = jax.nn.log_softmax(z, axis=1)
    nll = -jnp.take_along_axis(logp, targets[:, None].astype(jnp.int32),
                               axis=1)[:, 0]
    return jnp.mean(nll)


def _make_inputs(key, batch, embedding_size, num_classes, num_centers):
    k_emb, k_w, k_t = jax.random.split(key, 3)
    embeddings = jax.random.normal(k_emb, (batch, embedding_size),
                                   dtype=jnp.float32)
    stdv = 1.0 / math.sqrt(embedding_size)
    weight = jax.random.uniform(
        k_w, (num_classes * num_centers, embedding_size),
        minval=-stdv, maxval=stdv, dtype=jnp.float32)
    targets = jax.random.randint(k_t, (batch,), 0, num_classes,
                                 dtype=jnp.int32)
    return embeddings, weight, targets


if __name__ == "__main__":
    key = jax.random.PRNGKey(0)
    k_a, k_b = jax.random.split(key)

    # Config A: multi-center, even batch.  Check the f32 path tightly and the
    # bf16 (perf default) path loosely.
    emb_a, w_a, t_a = _make_inputs(k_a, batch=8, embedding_size=32,
                                   num_classes=8, num_centers=2)
    ref_a = cluster_loss_ref(emb_a, w_a, t_a, num_classes=8, num_centers=2)

    loss_a_f32 = jax.block_until_ready(
        cluster_loss(emb_a, w_a, t_a, num_classes=8, num_centers=2,
                     compute_dtype=jnp.float32))
    assert jnp.allclose(loss_a_f32, ref_a, rtol=1e-4, atol=1e-4), \
        (loss_a_f32, ref_a)

    loss_a_bf16 = jax.block_until_ready(
        cluster_loss(emb_a, w_a, t_a, num_classes=8, num_centers=2,
                     compute_dtype=jnp.bfloat16))
    assert jnp.allclose(loss_a_bf16, ref_a, rtol=5e-2, atol=5e-1), \
        (loss_a_bf16, ref_a)

    # Config B: single center, uneven batch (exercises padding mask and the
    # num_centers == 1 branch).
    emb_b, w_b, t_b = _make_inputs(k_b, batch=13, embedding_size=32,
                                   num_classes=8, num_centers=1)
    ref_b = cluster_loss_ref(emb_b, w_b, t_b, num_classes=8, num_centers=1)

    loss_b_f32 = jax.block_until_ready(
        cluster_loss(emb_b, w_b, t_b, num_classes=8, num_centers=1,
                     compute_dtype=jnp.float32))
    assert jnp.allclose(loss_b_f32, ref_b, rtol=1e-4, atol=1e-4), \
        (loss_b_f32, ref_b)

    print("KERNEL_OK")
</pallas_src>

<mosaic_0001>
module attributes {stable_mosaic.version = 11 : i64} {
  func.func @_cluster_loss_kernel(%arg0: i32, %arg1: memref<8x32xf32, #tpu.memory_space<vmem>>, %arg2: memref<32x16xf32, #tpu.memory_space<vmem>>, %arg3: memref<8x1xi32, #tpu.memory_space<vmem>>, %arg4: memref<8x1xf32, #tpu.memory_space<vmem>>) attributes {dimension_semantics = [#tpu.dimension_semantics<parallel>], iteration_bounds = array<i64: 1>, scalar_prefetch = 0 : i64, scratch_operands = 0 : i64, tpu.core_type = #tpu.core_type<tc>, window_params = [{transform_indices = @transform_0, window_bounds = array<i64: 8, 32>}, {pipeline_mode = #tpu.pipeline_mode<synchronous>, transform_indices = @transform_1, window_bounds = array<i64: 32, 16>}, {transform_indices = @transform_2, window_bounds = array<i64: 8, 1>}, {transform_indices = @transform_3, window_bounds = array<i64: 8, 1>}]} {
    %c0 = arith.constant 0 : index
    %c0_0 = arith.constant 0 : index
    %0 = vector.load %arg1[%c0, %c0_0] : memref<8x32xf32, #tpu.memory_space<vmem>>, vector<8x32xf32>
    %c0_1 = arith.constant 0 : index
    %c0_2 = arith.constant 0 : index
    %1 = vector.load %arg2[%c0_1, %c0_2] : memref<32x16xf32, #tpu.memory_space<vmem>>, vector<32x16xf32>
    %cst = arith.constant dense<0.000000e+00> : vector<8x16xf32>
    %2 = tpu.matmul %0, %1, %cst {dimension_numbers = #tpu.dot_dimension_numbers<[1], [0], [0], [1], [0, 0, 1, 1], [], []>} : vector<8x32xf32>, vector<32x16xf32>, vector<8x16xf32> -> vector<8x16xf32>
    %3 = arith.mulf %1, %1 : vector<32x16xf32>
    %cst_3 = arith.constant dense<0.000000e+00> : vector<16xf32>
    %4 = vector.multi_reduction <add>, %3, %cst_3 [0] : vector<32x16xf32> to vector<16xf32>
    %5 = vector.shape_cast %4 : vector<16xf32> to vector<1x16xf32>
    %6 = math.sqrt %5 : vector<1x16xf32>
    %cst_4 = arith.constant 9.99999996E-13 : f32
    %7 = vector.broadcast %cst_4 : f32 to vector<1x16xf32>
    %8 = arith.maximumf %6, %7 : vector<1x16xf32>
    %cst_5 = arith.constant 1.000000e+00 : f32
    %9 = vector.broadcast %cst_5 : f32 to vector<1x16xf32>
    %10 = arith.divf %9, %8 : vector<1x16xf32>
    %11 = vector.broadcast %10 : vector<1x16xf32> to vector<8x16xf32>
    %12 = arith.mulf %2, %11 : vector<8x16xf32>
    %13 = vector.extract_strided_slice %12 {offsets = [0, 0], sizes = [8, 8], strides = [1, 1]} : vector<8x16xf32> to vector<8x8xf32>
    %14 = vector.extract_strided_slice %12 {offsets = [0, 8], sizes = [8, 8], strides = [1, 1]} : vector<8x16xf32> to vector<8x8xf32>
    %cst_6 = arith.constant 1.000000e+01 : f32
    %15 = vector.broadcast %cst_6 : f32 to vector<8x8xf32>
    %16 = arith.mulf %13, %15 : vector<8x8xf32>
    %cst_7 = arith.constant 1.000000e+01 : f32
    %17 = vector.broadcast %cst_7 : f32 to vector<8x8xf32>
    %18 = arith.mulf %14, %17 : vector<8x8xf32>
    %19 = arith.maximumf %16, %18 : vector<8x8xf32>
    %20 = arith.subf %16, %19 : vector<8x8xf32>
    %21 = math.exp %20 : vector<8x8xf32>
    %22 = arith.subf %18, %19 : vector<8x8xf32>
    %23 = math.exp %22 : vector<8x8xf32>
    %24 = arith.addf %21, %23 : vector<8x8xf32>
    %cst_8 = arith.constant 1.000000e+00 : f32
    %25 = vector.broadcast %cst_8 : f32 to vector<8x8xf32>
    %26 = arith.divf %25, %24 : vector<8x8xf32>
    %27 = arith.mulf %21, %26 : vector<8x8xf32>
    %28 = arith.mulf %13, %27 : vector<8x8xf32>
    %29 = arith.mulf %23, %26 : vector<8x8xf32>
    %30 = arith.mulf %14, %29 : vector<8x8xf32>
    %31 = arith.addf %28, %30 : vector<8x8xf32>
    %cst_9 = arith.constant 2.000000e+01 : f32
    %32 = vector.broadcast %cst_9 : f32 to vector<8x8xf32>
    %33 = arith.mulf %31, %32 : vector<8x8xf32>
    %cst_10 = arith.constant dense<0xFF800000> : vector<8xf32>
    %34 = vector.multi_reduction <maximumf>, %33, %cst_10 [1] : vector<8x8xf32> to vector<8xf32>
    %35 = vector.shape_cast %34 : vector<8xf32> to vector<8x1xf32>
    %36 = vector.broadcast %35 : vector<8x1xf32> to vector<8x8xf32>
    %37 = arith.subf %33, %36 : vector<8x8xf32>
    %38 = math.exp %37 : vector<8x8xf32>
    %cst_11 = arith.constant dense<0.000000e+00> : vector<8xf32>
    %39 = vector.multi_reduction <add>, %38, %cst_11 [1] : vector<8x8xf32> to vector<8xf32>
    %40 = vector.shape_cast %39 : vector<8xf32> to vector<8x1xf32>
    %41 = math.log %40 : vector<8x1xf32>
    %42 = arith.addf %41, %35 : vector<8x1xf32>
    %c0_12 = arith.constant 0 : index
    %c0_13 = arith.constant 0 : index
    %43 = vector.load %arg3[%c0_12, %c0_13] : memref<8x1xi32, #tpu.memory_space<vmem>>, vector<8x1xi32>
    %44 = tpu.iota {dimensions = array<i32: 1>} : vector<8x8xi32>
    %45 = vector.broadcast %43 : vector<8x1xi32> to vector<8x8xi32>
    %46 = arith.cmpi eq, %44, %45 : vector<8x8xi32>
    %cst_14 = arith.constant 0.000000e+00 : f32
    %47 = vector.broadcast %cst_14 : f32 to vector<8x8xf32>
    %48 = arith.select %46, %33, %47 : vector<8x8xi1>, vector<8x8xf32>
    %cst_15 = arith.constant dense<0.000000e+00> : vector<8xf32>
    %49 = vector.multi_reduction <add>, %48, %cst_15 [1] : vector<8x8xf32> to vector<8xf32>
    %50 = vector.shape_cast %49 : vector<8xf32> to vector<8x1xf32>
    %51 = arith.subf %42, %50 : vector<8x1xf32>
    %c8_i32 = arith.constant 8 : i32
    %52 = arith.muli %arg0, %c8_i32 : i32
    %53 = tpu.iota {dimensions = array<i32: 0>} : vector<8x1xi32>
    %54 = vector.broadcast %52 : i32 to vector<8x1xi32>
    %55 = arith.addi %54, %53 : vector<8x1xi32>
    %c8_i32_16 = arith.constant 8 : i32
    %56 = vector.broadcast %c8_i32_16 : i32 to vector<8x1xi32>
    %57 = arith.cmpi slt, %55, %56 : vector<8x1xi32>
    %cst_17 = arith.constant 0.000000e+00 : f32
    %58 = vector.broadcast %cst_17 : f32 to vector<8x1xf32>
    %59 = arith.select %57, %51, %58 : vector<8x1xi1>, vector<8x1xf32>
    %c0_18 = arith.constant 0 : index
    %c0_19 = arith.constant 0 : index
    %60 = vector.load %arg4[%c0_18, %c0_19] : memref<8x1xf32, #tpu.memory_space<vmem>>, vector<8x1xf32>
    tpu.vector_store %arg4[%c0_18, %c0_19], %59 {strides = array<i32>} : memref<8x1xf32, #tpu.memory_space<vmem>>, vector<8x1xf32>,
    return
  }
  func.func @transform_0(%arg0: i32) -> (i32, i32) {
    %c0_i32 = arith.constant 0 : i32
    %c0_i32_0 = arith.constant 0 : i32
    return %arg0, %c0_i32 : i32, i32
  }
  func.func @transform_1(%arg0: i32) -> (i32, i32) {
    %c0_i32 = arith.constant 0 : i32
    %c0_i32_0 = arith.constant 0 : i32
    %c0_i32_1 = arith.constant 0 : i32
    return %c0_i32, %c0_i32_0 : i32, i32
  }
  func.func @transform_2(%arg0: i32) -> (i32, i32) {
    %c0_i32 = arith.constant 0 : i32
    %c0_i32_0 = arith.constant 0 : i32
    return %arg0, %c0_i32 : i32, i32
  }
  func.func @transform_3(%arg0: i32) -> (i32, i32) {
    %c0_i32 = arith.constant 0 : i32
    %c0_i32_0 = arith.constant 0 : i32
    return %arg0, %c0_i32 : i32, i32
  }
}

</mosaic_0001>

<llo_original>
// kernel: tpu_custom_call.1
$region0: #{tpu_custom_call.1}
  #allocation0 [shape = 'u32[]', space=smem, size = 0x4, offset = 0x4, fixed_abs, tag = 'smem constant byte address 0x4 - core index']
  #allocation1 [shape = 'u32[144,128]{1,0:T(1,128)}', space=vmem, size = 0x12000, scoped, tag = 'internal scratch']
  %s0 = inlined_call_operand.vmem [shape: f32[8,32], index: 0, kind: input, shape index: {}]
  %s1 = inlined_call_operand.vmem [shape: f32[32,16], index: 1, kind: input, shape index: {}]
  %s2 = inlined_call_operand.vmem [shape: s32[8,1], index: 2, kind: input, shape index: {}]
  %s3 = inlined_call_operand.vmem [shape: f32[8,1], index: 3, kind: output, shape index: {}]
  %s4 = sld [smem:[#allocation0]]
  $region22: #{tpu_custom_call.1} parent=0
    _
  %s6 = ssub.s32 1, %s4
  %s7 = scalar_select 0, %s6, %s4
  // Predicated region
  $region2: #{tpu_custom_call.1} parent=0 // pred_check
    _
  $region3: #{tpu_custom_call.1} parent=0 // pred_check_branch
    %9 = sbr.rel (0) target = $region5
  $region4: #{tpu_custom_call.1} parent=0 // pred_region
    _
  $region5: #{tpu_custom_call.1} parent=0 // pred_fallthru
    _
  // Predicated region
  $region6: #{tpu_custom_call.1} parent=0 // pred_check
    _
  $region7: #{tpu_custom_call.1} parent=0 // pred_check_branch
    %11 = sbr.rel (0) target = $region9
  $region8: #{tpu_custom_call.1} parent=0 // pred_region
    _
  $region9: #{tpu_custom_call.1} parent=0 // pred_fallthru
    _
  // Predicated region
  $region10: #{tpu_custom_call.1} parent=0 // pred_check
    _
  $region11: #{tpu_custom_call.1} parent=0 // pred_check_branch
    %13 = sbr.rel (0) target = $region13
  $region12: #{tpu_custom_call.1} parent=0 // pred_region
    _
  $region13: #{tpu_custom_call.1} parent=0 // pred_fallthru
    _
  %v14 = vld [vmem:[%s0] sm:$0xff]
  %v15 = vld [vmem:[%s1] sm:$0xff]
  %v16 = vld [vmem:[%s1 + $0x8] sm:$0xff]
  %v17 = vld [vmem:[%s1 + $0x10] sm:$0xff]
  %v18 = vld [vmem:[%s1 + $0x18] sm:$0xff]
  %vm19 = vcmask 261120
  %v21 = vsel %vm19, %v14, 0
  %23 = vmatprep.subr.mxu0 0.0
  %24 = vmatpush1.msra.mxu0 %v15
  %25 = vmatprep.subr.mxu0 0.0
  %26 = vmatpush1.msra.mxu0 %v16
  %27 = vmatprep.subr.mxu0 0.0
  %28 = vmatpush1.msra.mxu0 %v17
  %29 = vmatprep.subr.mxu0 0.0
  %30 = vmatpush1.msra.mxu0 %v18
  %31 = vmatprep.subr.mxu0 0.0
  %32 = vmatpush1.msra.mxu0 0.0
  %33 = vmatprep.subr.mxu0 0.0
  %34 = vmatpush1.msra.mxu0 0.0
  %35 = vmatprep.subr.mxu0 0.0
  %36 = vmatpush1.msra.mxu0 0.0
  %37 = vmatprep.subr.mxu0 0.0
  %38 = vmatpush1.msra.mxu0 0.0
  %39 = vmatprep.subr.mxu0 0.0
  %40 = vmatpush1.msra.mxu0 0.0
  %41 = vmatprep.subr.mxu0 0.0
  %42 = vmatpush1.msra.mxu0 0.0
  %43 = vmatprep.subr.mxu0 0.0
  %44 = vmatpush1.msra.mxu0 0.0
  %45 = vmatprep.subr.mxu0 0.0
  %46 = vmatpush1.msra.mxu0 0.0
  %47 = vmatprep.subr.mxu0 0.0
  %48 = vmatpush1.msra.mxu0 0.0
  %49 = vmatprep.subr.mxu0 0.0
  %50 = vmatpush1.msra.mxu0 0.0
  %51 = vmatprep.subr.mxu0 0.0
  %52 = vmatpush1.msra.mxu0 0.0
  %53 = vmatprep.subr.mxu0 0.0
  %54 = vmatpush1.msra.mxu0 0.0
  %55 = vmatprep.subr.mxu0 0.0
  %56 = vmatpush1.msra.mxu0 0.0
  %57 = vmatprep.subr.mxu0 0.0
  %58 = vmatpush1.msra.mxu0 0.0
  %59 = vmatprep.subr.mxu0 0.0
  %60 = vmatpush1.msra.mxu0 0.0
  %61 = vmatprep.subr.mxu0 0.0
  %62 = vmatpush1.msra.mxu0 0.0
  %63 = vmatprep.subr.mxu0 0.0
  %64 = vmatpush1.msra.mxu0 0.0
  %65 = vmatprep.subr.mxu0 0.0
  %66 = vmatpush1.msra.mxu0 0.0
  %67 = vmatprep.subr.mxu0 0.0
  %68 = vmatpush1.msra.mxu0 0.0
  %69 = vmatprep.subr.mxu0 0.0
  %70 = vmatpush1.msra.mxu0 0.0
  %71 = vmatprep.subr.mxu0 0.0
  %72 = vmatpush1.msra.mxu0 0.0
  %73 = vmatprep.subr.mxu0 0.0
  %74 = vmatpush1.msra.mxu0 0.0
  %75 = vmatprep.subr.mxu0 0.0
  %76 = vmatpush1.msra.mxu0 0.0
  %77 = vmatprep.subr.mxu0 0.0
  %78 = vmatpush1.msra.mxu0 0.0
  %79 = vmatprep.subr.mxu0 0.0
  %80 = vmatpush1.msra.mxu0 0.0
  %81 = vmatprep.subr.mxu0 0.0
  %82 = vmatpush1.msra.mxu0 0.0
  %83 = vmatprep.subr.mxu0 0.0
  %84 = vmatpush1.msra.mxu0 0.0
  %85 = vmatprep.subr.mxu0 0.0
  %86 = vmatpush1.msra.mxu0 0.0
  %87 = vmatprep.mubr.f32.mxu0 0.0
  %88 = vmatmul.mubr.f32.gmra.mrb[0].mxu0 %v21
  %v89 = vpop.f32.mrb[0].mxu0
  %v90 = vadd.f32 0.0, %v89
  %v91 = vpop.f32.mrb[0].mxu0
  %92 = vdwg.mxu0
  %v93 = vmul.f32 %v15, %v15
  %v94 = vmul.f32 %v16, %v16
  %v95 = vmul.f32 %v17, %v17
  %v96 = vmul.f32 %v18, %v18
  %vm97 = vcmask 130048
  %v98 = vsel %vm97, %v93, 0.0
  %v99 = vsel %vm97, %v94, 0.0
  %v100 = vadd.f32 %v98, %v99
  %v101 = vsel %vm97, %v95, 0.0
  %v102 = vadd.f32 %v100, %v101
  %v103 = vsel %vm97, %v96, 0.0
  %v104 = vadd.f32 %v102, %v103
  %v105 = vrot.slane %v104, 4
  %v106 = vadd.f32 %v104, %v105
  %v107 = vrot.slane %v106, 2
  %v108 = vadd.f32 %v106, %v107
  %v109 = vrot.slane %v108, 1
  %v110 = vadd.f32 %v108, %v109
  %v111 = vrsqrt.pop %v110
  %v112 = vmul.f32 %v110, %v111
  %vm113 = vcmp.eq.f32.partialorder %v110, inf
  %v114 = vsel %vm113, %v110, %v112
  %vm115 = vcmp.eq.f32.partialorder %v110, 0.0
  %v116 = vand.u32 %v110, 2147483648
  %v117 = vsel %vm115, %v116, %v114
  %v118 = vmax.f32 %v117, 1e-12
  %v119 = vrcp.pop %v118
  %v120 = vmul.f32 1.0, %v119
  %v121 = vmul.f32 %v90, %v120
  %v122 = vmul.f32 %v121, 10.0
  %124 = vrot.lane.b32.xlu0 %v122, 120
  %v125 = vpop.permute.xlu0 %124
  %v127 = vmax.f32 %v122, %v125
  %v128 = vsub.f32 %v122, %v127
  %v129 = vmul.f32 %v128, 1.442695
  %v130 = vpow.pop %v129
  %132 = vrot.lane.b32.xlu0 %v127, 8
  %v133 = vpop.permute.xlu0 %132
  %v135 = vsub.f32 %v122, %v133
  %v136 = vmul.f32 %v135, 1.442695
  %v137 = vpow.pop %v136
  %139 = vrot.lane.b32.xlu0 %v137, 120
  %v140 = vpop.permute.xlu0 %139
  %v142 = vadd.f32 %v130, %v140
  %v143 = vrcp.pop %v142
  %v144 = vmul.f32 1.0, %v143
  %v145 = vmul.f32 %v130, %v144
  %v146 = vmul.f32 %v121, %v145
  %148 = vrot.lane.b32.xlu0 %v144, 8
  %v149 = vpop.permute.xlu0 %148
  %v151 = vmul.f32 %v137, %v149
  %v152 = vmul.f32 %v121, %v151
  %154 = vrot.lane.b32.xlu0 %v152, 120
  %v155 = vpop.permute.xlu0 %154
  %v157 = vadd.f32 %v146, %v155
  %v158 = vmul.f32 %v157, 20.0
  %vm159 = vcmask 64512
  %v160 = vsel %vm159, %v158, -inf
  %161 = vmax.xlane.f32.xlu0 %v160
  %v162 = vpop.xlane.xlu0 %161
  %v163 = vsub.f32 %v158, %v162
  %v164 = vmul.f32 %v163, 1.442695
  %v165 = vpow.pop %v164
  %v166 = vsel %vm159, %v165, 0.0
  %167 = vadd.xlane.f32.xlu0 %v166
  %v168 = vpop.xlane.xlu0 %167
  %v169 = vlog2.pop %v168
  %v170 = vmul.f32 %v169, 0.6931472
  %v171 = vadd.f32 %v170, %v162
  %v172 = vld [vmem:[%s2] sm:$0xff]
  %v173 = vlaneseq
  %v174 = vand.u32 %v173, 127
  %175 = vset.pattern.permute.xlu0 0
  %176 = vperm.xlu0 %175, %v172
  %v177 = vpop.permute.xlu0 %176
  %vm178 = vcmp.eq.s32.totalorder %v174, %v177
  %v179 = vsel %vm178, %v158, 0.0
  %v180 = vsel %vm159, %v179, 0.0
  %181 = vadd.xlane.f32.xlu0 %v180
  %v182 = vpop.xlane.xlu0 %181
  %v183 = vsub.f32 %v171, %v182
  %s184 = smul.u32 0, 8
  %v185 = vlaneseq
  %v186 = vshrl.u32 %v185, 7
  %v187 = vstv %s184
  %v188 = vadd.s32 %v187, %v186
  %vm189 = vcmp.lt.s32.totalorder %v188, 8
  %v190 = vsel %vm189, %v183, 0.0
  %vm191 = vcmask 7168
  %192 = vst.msk [vmem:[%s3] sm:$0xff] %vm191, %v190
  // Predicated region
  $region14: #{tpu_custom_call.1} parent=0 // pred_check
    _
  $region15: #{tpu_custom_call.1} parent=0 // pred_check_branch
    %194 = sbr.rel (0) target = $region17
  $region16: #{tpu_custom_call.1} parent=0 // pred_region
    _
  $region17: #{tpu_custom_call.1} parent=0 // pred_fallthru
    _
  // Predicated region
  $region18: #{tpu_custom_call.1} parent=0 // pred_check
    _
  $region19: #{tpu_custom_call.1} parent=0 // pred_check_branch
    %196 = sbr.rel (0) target = $region21
  $region20: #{tpu_custom_call.1} parent=0 // pred_region
    _
  $region21: #{tpu_custom_call.1} parent=0 // pred_fallthru
    _

</llo_original>
